<compile_context>
chip_gen: v5e
topology: v5e:2x2
jax: 0.10.0
libtpu: 0.0.40
codegen_flags: <defaults>
</compile_context>

<pallas_src>
import functools

import jax
import jax.numpy as jnp
from jax.experimental import pallas as pl
from jax.experimental.pallas import tpu as pltpu


# ---------------------------------------------------------------------------
# budgets / blocking helpers
# ---------------------------------------------------------------------------

def _vmem_limit_bytes() -> int:
    """Per-generation scoped-VMEM budget (v7x: 64 MiB physical, v5e/v6e: 128 MiB)."""
    cap = 64 << 20
    try:
        info = pltpu.get_tpu_info()
        cap = int(getattr(info, "vmem_capacity_bytes", cap))
    except Exception:
        pass
    # request half of physical, clamped to [32 MiB, 64 MiB] (safe on all gens)
    return int(min(64 << 20, max(32 << 20, cap // 2)))


def _largest_divisor_leq(n: int, cap: int) -> int:
    cap = max(1, min(n, cap))
    for d in range(cap, 0, -1):
        if n % d == 0:
            return d
    return 1


def _pick_blocking(n: int, c: int, hw: int, itemsize: int, budget_bytes: int):
    """Choose (images per block nb, lane tile) so one x block is ~budget_bytes.

    Small feature maps: keep the full spatial extent and batch several images per
    grid step.  Large feature maps: one image per step, lane tile a multiple of 128.
    """
    slab = c * hw * itemsize                         # one image's (C, HW) slab
    if slab <= budget_bytes:
        nb = _largest_divisor_leq(n, budget_bytes // max(1, slab))
        return nb, hw
    max_lanes = max(128, budget_bytes // max(1, c * itemsize))
    tile_hw = max(128, (max_lanes // 128) * 128)
    return 1, min(tile_hw, hw)


# ---------------------------------------------------------------------------
# kernels
# ---------------------------------------------------------------------------

def _bn_stats_kernel(x_ref, sum_ref, sumsq_ref, *, hw, tile_hw, need_mask):
    """Per-image-block partial sum(x) and sum(x*x), accumulated over the HW-tile axis."""
    j = pl.program_id(1)

    @pl.when(j == 0)
    def _init():
        sum_ref[...] = jnp.zeros_like(sum_ref)
        sumsq_ref[...] = jnp.zeros_like(sumsq_ref)

    x = x_ref[...].astype(jnp.float32)               # (nb, C, tile_hw)

    def _accum(xv):
        sum_ref[...] += jnp.sum(jnp.sum(xv, axis=2, keepdims=True), axis=0)         # (C, 1)
        sumsq_ref[...] += jnp.sum(jnp.sum(xv * xv, axis=2, keepdims=True), axis=0)  # (C, 1)

    if need_mask:
        last = pl.num_programs(1) - 1

        @pl.when(j < last)                           # interior tiles: no mask work
        def _interior():
            _accum(x)

        @pl.when(j == last)                          # only the tail tile pays the mask
        def _tail():
            lane = jax.lax.broadcasted_iota(jnp.int32, x.shape, 2)
            _accum(jnp.where(j * tile_hw + lane < hw, x, 0.0))
    else:
        _accum(x)


def _bn_apply_kernel(x_ref, scale_ref, shift_ref, o_ref):
    """y = x * scale + shift (normalization + affine folded per channel)."""
    y = x_ref[...].astype(jnp.float32) * scale_ref[...] + shift_ref[...]
    o_ref[...] = y.astype(o_ref.dtype)


def _bn_fused_train_kernel(x_ref, w_ref, b_ref, o_ref, mean_ref, var_ref, *,
                           eps, inv_count):
    """Single-pass training BN for activations that fit in VMEM (~2x HBM traffic)."""
    xf = x_ref[...].astype(jnp.float32)              # (N, C, HW)
    s = jnp.sum(jnp.sum(xf, axis=2, keepdims=True), axis=0)         # (C, 1)
    sq = jnp.sum(jnp.sum(xf * xf, axis=2, keepdims=True), axis=0)   # (C, 1)
    mean = s * inv_count
    # biased variance (torch.var unbiased=False); guard tiny negatives from
    # E[x^2]-E[x]^2 cancellation
    var = jnp.maximum(sq * inv_count - mean * mean, 0.0)
    mean_ref[...] = mean
    var_ref[...] = var
    inv_std = jax.lax.rsqrt(var + eps)
    scale = w_ref[...] * inv_std                     # (C, 1)
    shift = b_ref[...] - mean * scale
    o_ref[...] = (xf * scale + shift).astype(o_ref.dtype)


# ---------------------------------------------------------------------------
# wrapper
# ---------------------------------------------------------------------------

def batchnorm2d_forward(x, weight, bias, running_mean, running_var,
                        eps=1e-5, momentum=0.1, training=True, *,
                        apply_block_bytes=None, stats_block_bytes=None,
                        fused_threshold_bytes=None):
    """BatchNorm2d forward matching the reference module.

    x: (N, C, H, W); weight/bias/running_mean/running_var: (C,)
    Returns (out (N,C,H,W), new_running_mean (C,), new_running_var (C,)).
    """
    N, C, H, W = x.shape
    HW = H * W
    x3 = x.reshape(N, C, HW)                         # free reshape, no data movement
    itemsize = jnp.dtype(x.dtype).itemsize

    vmem_limit = _vmem_limit_bytes()
    if apply_block_bytes is None:                    # apply double-buffers in + out (~4x block)
        apply_block_bytes = min(4 << 20, vmem_limit // 8)
    if stats_block_bytes is None:                    # stats double-buffers only the input (~2x block)
        stats_block_bytes = min(8 << 20, vmem_limit // 4)
    if fused_threshold_bytes is None:                # fused path holds x, out and f32 temps at once
        fused_threshold_bytes = vmem_limit // 6

    # ---------------- fused single-pass path (training, x fits in VMEM) ----------------
    if training and N * C * HW * 4 <= fused_threshold_bytes:
        w2 = weight.astype(jnp.float32).reshape(C, 1)
        b2 = bias.astype(jnp.float32).reshape(C, 1)
        out3, mean_c1, var_c1 = pl.pallas_call(
            functools.partial(_bn_fused_train_kernel,
                              eps=float(eps), inv_count=1.0 / float(N * HW)),
            out_shape=(jax.ShapeDtypeStruct((N, C, HW), x.dtype),
                       jax.ShapeDtypeStruct((C, 1), jnp.float32),
                       jax.ShapeDtypeStruct((C, 1), jnp.float32)),
            compiler_params=pltpu.CompilerParams(vmem_limit_bytes=vmem_limit),
        )(x3, w2, b2)
        mean = mean_c1.reshape(C)
        var = var_c1.reshape(C)
        new_running_mean = (1.0 - momentum) * running_mean + momentum * mean
        # NOTE: the reference module mixes the *biased* variance into running_var
        # (unlike stock nn.BatchNorm2d's M/(M-1) correction); we match the module.
        new_running_var = (1.0 - momentum) * running_var + momentum * var
        # TODO(synk): num_batches_tracked is a host-side integer counter; increment it in the caller.
        return out3.reshape(N, C, H, W), new_running_mean, new_running_var

    # ---------------- streaming stats pass (training) ----------------
    if training:
        nb_s, tile_s = _pick_blocking(N, C, HW, itemsize, stats_block_bytes)
        num_n_s = N // nb_s
        num_j_s = pl.cdiv(HW, tile_s)
        need_mask = (HW % tile_s) != 0
        stats_kernel = functools.partial(
            _bn_stats_kernel, hw=HW, tile_hw=tile_s, need_mask=need_mask)
        psum, psumsq = pl.pallas_call(
            stats_kernel,
            grid=(num_n_s, num_j_s),
            in_specs=[pl.BlockSpec((nb_s, C, tile_s), lambda n, j: (n, 0, j))],
            out_specs=(pl.BlockSpec((None, C, 1), lambda n, j: (n, 0, 0)),
                       pl.BlockSpec((None, C, 1), lambda n, j: (n, 0, 0))),
            out_shape=(jax.ShapeDtypeStruct((num_n_s, C, 1), jnp.float32),
                       jax.ShapeDtypeStruct((num_n_s, C, 1), jnp.float32)),
            compiler_params=pltpu.CompilerParams(
                # N-axis produces independent partials -> parallel (both v7x TCs);
                # HW-tile axis carries the accumulation -> arbitrary.
                dimension_semantics=("parallel", "arbitrary"),
                vmem_limit_bytes=vmem_limit),
        )(x3)

        inv_count = 1.0 / float(N * HW)
        mean = jnp.sum(psum, axis=0).reshape(C) * inv_count
        var = jnp.maximum(jnp.sum(psumsq, axis=0).reshape(C) * inv_count - mean * mean, 0.0)
        new_running_mean = (1.0 - momentum) * running_mean + momentum * mean
        # NOTE: biased variance mixed into running_var, matching the reference module.
        new_running_var = (1.0 - momentum) * running_var + momentum * var
        # TODO(synk): num_batches_tracked is a host-side integer counter; increment it in the caller.
    else:
        mean = running_mean
        var = running_var
        new_running_mean = running_mean
        new_running_var = running_var

    # fold normalization + affine into per-channel scale/shift (tiny (C,)-sized math)
    inv_std = jax.lax.rsqrt(var.astype(jnp.float32) + eps)
    scale = (weight * inv_std).reshape(C, 1).astype(jnp.float32)
    shift = (bias - mean * weight * inv_std).reshape(C, 1).astype(jnp.float32)

    nb_a, tile_a = _pick_blocking(N, C, HW, itemsize, apply_block_bytes)
    num_n_a = N // nb_a
    num_j_a = pl.cdiv(HW, tile_a)
    out3 = pl.pallas_call(
        _bn_apply_kernel,
        grid=(num_n_a, num_j_a),
        in_specs=[pl.BlockSpec((nb_a, C, tile_a), lambda n, j: (n, 0, j)),
                  pl.BlockSpec((C, 1), lambda n, j: (0, 0)),
                  pl.BlockSpec((C, 1), lambda n, j: (0, 0))],
        out_specs=pl.BlockSpec((nb_a, C, tile_a), lambda n, j: (n, 0, j)),
        out_shape=jax.ShapeDtypeStruct((N, C, HW), x.dtype),
        compiler_params=pltpu.CompilerParams(
            dimension_semantics=("parallel", "parallel"),
            vmem_limit_bytes=vmem_limit),
    )(x3, scale, shift)

    return out3.reshape(N, C, H, W), new_running_mean, new_running_var


# ---------------------------------------------------------------------------
# self-test
# ---------------------------------------------------------------------------

if __name__ == "__main__":
    key = jax.random.PRNGKey(0)
    kx, kw, kb, kx2 = jax.random.split(key, 4)

    def ref_train(x, w, b, rm, rv, eps, momentum):
        mean = jnp.mean(x, axis=(0, 2, 3), keepdims=True)
        var = jnp.var(x, axis=(0, 2, 3), keepdims=True)          # biased (unbiased=False)
        y = (x - mean) / jnp.sqrt(var + eps)
        y = y * w[None, :, None, None] + b[None, :, None, None]
        new_rm = (1 - momentum) * rm + momentum * mean.reshape(-1)
        new_rv = (1 - momentum) * rv + momentum * var.reshape(-1)
        return y, new_rm, new_rv

    N, C, H, W = 2, 4, 16, 16
    x = jax.random.normal(kx, (N, C, H, W), dtype=jnp.float32)
    weight = 1.0 + 0.5 * jax.random.normal(kw, (C,), dtype=jnp.float32)
    bias = 0.1 * jax.random.normal(kb, (C,), dtype=jnp.float32)
    rm = jnp.zeros((C,), jnp.float32)
    rv = jnp.ones((C,), jnp.float32)

    # 1) training, fused single-pass path (x fits in VMEM)
    out, new_rm, new_rv = batchnorm2d_forward(x, weight, bias, rm, rv,
                                              eps=1e-5, momentum=0.1, training=True)
    jax.block_until_ready((out, new_rm, new_rv))
    ref_y, ref_rm, ref_rv = ref_train(x, weight, bias, rm, rv, 1e-5, 0.1)
    assert jnp.allclose(out, ref_y, atol=1e-5, rtol=1e-5)
    assert jnp.allclose(new_rm, ref_rm, atol=1e-5, rtol=1e-5)
    assert jnp.allclose(new_rv, ref_rv, atol=1e-5, rtol=1e-5)

    # 2) eval mode (uses running stats, no update)
    out_e, rm2, rv2 = batchnorm2d_forward(x, weight, bias, new_rm, new_rv,
                                          eps=1e-5, momentum=0.1, training=False)
    jax.block_until_ready(out_e)
    ref_e = (x - new_rm[None, :, None, None]) / jnp.sqrt(new_rv[None, :, None, None] + 1e-5)
    ref_e = ref_e * weight[None, :, None, None] + bias[None, :, None, None]
    assert jnp.allclose(out_e, ref_e, atol=1e-5, rtol=1e-5)
    assert jnp.allclose(rm2, new_rm) and jnp.allclose(rv2, new_rv)

    # 3) training, streaming two-pass path with N-blocking (fused path disabled)
    out_s, rm_s, rv_s = batchnorm2d_forward(x, weight, bias, rm, rv,
                                            eps=1e-5, momentum=0.1, training=True,
                                            fused_threshold_bytes=0)
    jax.block_until_ready(out_s)
    assert jnp.allclose(out_s, ref_y, atol=1e-5, rtol=1e-5)
    assert jnp.allclose(rm_s, ref_rm, atol=1e-5, rtol=1e-5)
    assert jnp.allclose(rv_s, ref_rv, atol=1e-5, rtol=1e-5)

    # 4) training, streaming path with lane tiling + masked spatial tail
    #    (tiny block budgets force tile_hw=128 on HW=144 -> 2 tiles, masked last)
    N2, C2, H2, W2 = 2, 4, 12, 12
    x2 = jax.random.normal(kx2, (N2, C2, H2, W2), dtype=jnp.float32)
    out_t, rm_t, rv_t = batchnorm2d_forward(
        x2, weight, bias, rm, rv, eps=1e-5, momentum=0.1, training=True,
        fused_threshold_bytes=0,
        apply_block_bytes=C2 * 128 * 4, stats_block_bytes=C2 * 128 * 4)
    jax.block_until_ready(out_t)
    ref_y2, ref_rm2, ref_rv2 = ref_train(x2, weight, bias, rm, rv, 1e-5, 0.1)
    assert jnp.allclose(out_t, ref_y2, atol=1e-5, rtol=1e-5)
    assert jnp.allclose(rm_t, ref_rm2, atol=1e-5, rtol=1e-5)
    assert jnp.allclose(rv_t, ref_rv2, atol=1e-5, rtol=1e-5)

    print("KERNEL_OK")
</pallas_src>

<mosaic_0001>
module attributes {stable_mosaic.version = 11 : i64} {
  func.func @_bn_fused_train_kernel(%arg0: memref<2x4x256xf32, #tpu.memory_space<vmem>>, %arg1: memref<4x1xf32, #tpu.memory_space<vmem>>, %arg2: memref<4x1xf32, #tpu.memory_space<vmem>>, %arg3: memref<2x4x256xf32, #tpu.memory_space<vmem>>, %arg4: memref<4x1xf32, #tpu.memory_space<vmem>>, %arg5: memref<4x1xf32, #tpu.memory_space<vmem>>) attributes {dimension_semantics = [], scalar_prefetch = 0 : i64, scratch_operands = 0 : i64, tpu.core_type = #tpu.core_type<tc>} {
    %c0 = arith.constant 0 : index
    %c0_0 = arith.constant 0 : index
    %c0_1 = arith.constant 0 : index
    %0 = vector.load %arg0[%c0, %c0_0, %c0_1] : memref<2x4x256xf32, #tpu.memory_space<vmem>>, vector<2x4x256xf32>
    %cst = arith.constant dense<0.000000e+00> : vector<2x4xf32>
    %1 = vector.multi_reduction <add>, %0, %cst [2] : vector<2x4x256xf32> to vector<2x4xf32>
    %2 = vector.shape_cast %1 : vector<2x4xf32> to vector<2x4x1xf32>
    %cst_2 = arith.constant dense<0.000000e+00> : vector<4x1xf32>
    %3 = vector.multi_reduction <add>, %2, %cst_2 [0] : vector<2x4x1xf32> to vector<4x1xf32>
    %4 = arith.mulf %0, %0 : vector<2x4x256xf32>
    %cst_3 = arith.constant dense<0.000000e+00> : vector<2x4xf32>
    %5 = vector.multi_reduction <add>, %4, %cst_3 [2] : vector<2x4x256xf32> to vector<2x4xf32>
    %6 = vector.shape_cast %5 : vector<2x4xf32> to vector<2x4x1xf32>
    %cst_4 = arith.constant dense<0.000000e+00> : vector<4x1xf32>
    %7 = vector.multi_reduction <add>, %6, %cst_4 [0] : vector<2x4x1xf32> to vector<4x1xf32>
    %cst_5 = arith.constant 0.001953125 : f32
    %8 = vector.broadcast %cst_5 : f32 to vector<4x1xf32>
    %9 = arith.mulf %3, %8 : vector<4x1xf32>
    %cst_6 = arith.constant 0.001953125 : f32
    %10 = vector.broadcast %cst_6 : f32 to vector<4x1xf32>
    %11 = arith.mulf %7, %10 : vector<4x1xf32>
    %12 = arith.mulf %9, %9 : vector<4x1xf32>
    %13 = arith.subf %11, %12 : vector<4x1xf32>
    %cst_7 = arith.constant 0.000000e+00 : f32
    %14 = vector.broadcast %cst_7 : f32 to vector<4x1xf32>
    %15 = arith.maximumf %13, %14 : vector<4x1xf32>
    %c0_8 = arith.constant 0 : index
    %c0_9 = arith.constant 0 : index
    %16 = vector.load %arg4[%c0_8, %c0_9] : memref<4x1xf32, #tpu.memory_space<vmem>>, vector<4x1xf32>
    tpu.vector_store %arg4[%c0_8, %c0_9], %9 {strides = array<i32>} : memref<4x1xf32, #tpu.memory_space<vmem>>, vector<4x1xf32>,
    %c0_10 = arith.constant 0 : index
    %c0_11 = arith.constant 0 : index
    %17 = vector.load %arg5[%c0_10, %c0_11] : memref<4x1xf32, #tpu.memory_space<vmem>>, vector<4x1xf32>
    tpu.vector_store %arg5[%c0_10, %c0_11], %15 {strides = array<i32>} : memref<4x1xf32, #tpu.memory_space<vmem>>, vector<4x1xf32>,
    %cst_12 = arith.constant 9.99999974E-6 : f32
    %18 = vector.broadcast %cst_12 : f32 to vector<4x1xf32>
    %19 = arith.addf %15, %18 : vector<4x1xf32>
    %20 = math.rsqrt %19 : vector<4x1xf32>
    %c0_13 = arith.constant 0 : index
    %c0_14 = arith.constant 0 : index
    %21 = vector.load %arg1[%c0_13, %c0_14] : memref<4x1xf32, #tpu.memory_space<vmem>>, vector<4x1xf32>
    %22 = arith.mulf %21, %20 : vector<4x1xf32>
    %c0_15 = arith.constant 0 : index
    %c0_16 = arith.constant 0 : index
    %23 = vector.load %arg2[%c0_15, %c0_16] : memref<4x1xf32, #tpu.memory_space<vmem>>, vector<4x1xf32>
    %24 = arith.mulf %9, %22 : vector<4x1xf32>
    %25 = arith.subf %23, %24 : vector<4x1xf32>
    %26 = vector.shape_cast %22 : vector<4x1xf32> to vector<1x4x1xf32>
    %27 = vector.broadcast %26 : vector<1x4x1xf32> to vector<2x4x256xf32>
    %28 = arith.mulf %0, %27 : vector<2x4x256xf32>
    %29 = vector.shape_cast %25 : vector<4x1xf32> to vector<1x4x1xf32>
    %30 = vector.broadcast %29 : vector<1x4x1xf32> to vector<2x4x256xf32>
    %31 = arith.addf %28, %30 : vector<2x4x256xf32>
    %c0_17 = arith.constant 0 : index
    %c0_18 = arith.constant 0 : index
    %c0_19 = arith.constant 0 : index
    %32 = vector.load %arg3[%c0_17, %c0_18, %c0_19] : memref<2x4x256xf32, #tpu.memory_space<vmem>>, vector<2x4x256xf32>
    tpu.vector_store %arg3[%c0_17, %c0_18, %c0_19], %31 {strides = array<i32>} : memref<2x4x256xf32, #tpu.memory_space<vmem>>, vector<2x4x256xf32>,
    return
  }
}

</mosaic_0001>

<llo_original>
// kernel: tpu_custom_call.1
$region0: #{tpu_custom_call.1}
  #allocation0 [shape = 'u32[]', space=smem, size = 0x4, offset = 0x4, fixed_abs, tag = 'smem constant byte address 0x4 - core index']
  #allocation1 [shape = 'u32[72,128]{1,0:T(1,128)}', space=vmem, size = 0x9000, scoped, tag = 'internal scratch']
  %s0 = inlined_call_operand.hbm [shape: f32[2,4,256], index: 0, kind: input, shape index: {}]
  %s1 = inlined_call_operand.vmem [shape: f32[4,1], index: 1, kind: input, shape index: {}]
  %s2 = inlined_call_operand.vmem [shape: f32[4,1], index: 2, kind: input, shape index: {}]
  %s3 = inlined_call_operand.hbm [shape: f32[2,4,256], index: 3, kind: output, shape index: {0}]
  %s4 = inlined_call_operand.vmem [shape: f32[4,1], index: 4, kind: output, shape index: {1}]
  %s5 = inlined_call_operand.vmem [shape: f32[4,1], index: 5, kind: output, shape index: {2}]
  %6 = xla_tuple %s3, %s4, %s5
  %s7 = sld [smem:[#allocation0]]
  $region42: #{tpu_custom_call.1} parent=0
    _
  %s9 = ssub.s32 1, %s7
  %s10 = scalar_select 0, %s9, %s7
  $region1: #{tpu_custom_call.1} parent=0
    #allocation2 [shape = 'u8[8192]{0}', space=vmem, size = 0x2000, scoped, tag = 'input window, operand 0, single buffered']
    #allocation3 [shape = 's32[1]{0}', space=sflag, size = 0x4, scoped, tag = 'scoped memory for tpu_custom_call.1']
    #allocation4 [shape = 's32[1]{0}', space=sflag, size = 0x4, scoped, tag = 'scoped memory for tpu_custom_call.1']
    #allocation5 [shape = 'u8[8192]{0}', space=vmem, size = 0x2000, scoped, tag = 'output window, operand 0, single buffered']
    %11 = vsyncpa [#allocation3], 0
    %12 = vsyncpa [#allocation4], 0
    // Predicated region
    $region2: #{tpu_custom_call.1} parent=1 // pred_check
      _
    $region3: #{tpu_custom_call.1} parent=1 // pred_check_branch
      %14 = sbr.rel (0) target = $region5
    $region4: #{tpu_custom_call.1} parent=1 // pred_region
      %16 = vsyncadd [#allocation3], 0
      %s17 = sshll.u32 %s0, 4
      %s18 = int_to_ptr.hbm [resolvable:$true] %s17
      %s19 = sshll.u32 [#allocation2], 4
      %s20 = int_to_ptr.vmem [resolvable:$true] %s19
      %25 = dma.hbm_to_vmem [thread:$0]  %s18, 256, %s20, [#allocation3], 128, 128, 8
    $region5: #{tpu_custom_call.1} parent=1 // pred_fallthru
      _
    // Predicated region
    $region6: #{tpu_custom_call.1} parent=1 // pred_check
      _
    $region7: #{tpu_custom_call.1} parent=1 // pred_check_branch
      %27 = sbr.rel (0) target = $region9
    $region8: #{tpu_custom_call.1} parent=1 // pred_region
      _
    $region9: #{tpu_custom_call.1} parent=1 // pred_fallthru
      _
    // Predicated region
    $region10: #{tpu_custom_call.1} parent=1 // pred_check
      _
    $region11: #{tpu_custom_call.1} parent=1 // pred_check_branch
      %29 = sbr.rel (0) target = $region13
    $region12: #{tpu_custom_call.1} parent=1 // pred_region
      _
    $region13: #{tpu_custom_call.1} parent=1 // pred_fallthru
      _
    // Predicated region
    $region14: #{tpu_custom_call.1} parent=1 // pred_check
      _
    $region15: #{tpu_custom_call.1} parent=1 // pred_check_branch
      %31 = sbr.rel (0) target = $region17
    $region16: #{tpu_custom_call.1} parent=1 // pred_region
      %33 = dma.done [#allocation3], 256
    $region17: #{tpu_custom_call.1} parent=1 // pred_fallthru
      _
    %v34 = vld [vmem:[#allocation2] sm:$0xff]
    %v35 = vld [vmem:[#allocation2 + $0x8] sm:$0xff]
    %38 = vst [vmem:[#allocation1] ss:$2 sm:$0xff] %v34
    %v39 = vld.sshfl [vmem:[#allocation1] sm:$0xff pattern:$0x75316420]
    %v40 = vld.sshfl [vmem:[#allocation1 + $0x8] sm:$0xff pattern:$0x75316420]
    %s41 = scalar_lea.vmem [#allocation1], 16
    %42 = vst [vmem:[%s41] ss:$2 sm:$0xff] %v35
    %v43 = vld.sshfl [vmem:[#allocation1 + $0x10] sm:$0xff pattern:$0x75316420]
    %v44 = vld.sshfl [vmem:[#allocation1 + $0x18] sm:$0xff pattern:$0x75316420]
    %vm49 = vcmask 1043456
    %v50 = vsel %vm49, %v39, 0.0
    %v51 = vsel %vm49, %v40, 0.0
    %v52 = vadd.f32 %v50, %v51
    %53 = vadd.xlane.f32.xlu0 %v52
    %v54 = vpop.xlane.xlu0 %53
    %v55 = vsel %vm49, %v43, 0.0
    %v56 = vsel %vm49, %v44, 0.0
    %v57 = vadd.f32 %v55, %v56
    %58 = vadd.xlane.f32.xlu0 %v57
    %v59 = vpop.xlane.xlu0 %58
    %v60 = vsel %vm49, %v54, 0.0
    %v61 = vsel %vm49, %v59, 0.0
    %v62 = vadd.f32 %v60, %v61
    %v63 = vmul.f32 %v34, %v34
    %v64 = vmul.f32 %v35, %v35
    %67 = vst [vmem:[#allocation1] ss:$2 sm:$0xff] %v63
    %v68 = vld.sshfl [vmem:[#allocation1] sm:$0xff pattern:$0x75316420]
    %v69 = vld.sshfl [vmem:[#allocation1 + $0x8] sm:$0xff pattern:$0x75316420]
    %s70 = scalar_lea.vmem [#allocation1], 16
    %71 = vst [vmem:[%s70] ss:$2 sm:$0xff] %v64
    %v72 = vld.sshfl [vmem:[#allocation1 + $0x10] sm:$0xff pattern:$0x75316420]
    %v73 = vld.sshfl [vmem:[#allocation1 + $0x18] sm:$0xff pattern:$0x75316420]
    %v78 = vsel %vm49, %v68, 0.0
    %v79 = vsel %vm49, %v69, 0.0
    %v80 = vadd.f32 %v78, %v79
    %81 = vadd.xlane.f32.xlu0 %v80
    %v82 = vpop.xlane.xlu0 %81
    %v83 = vsel %vm49, %v72, 0.0
    %v84 = vsel %vm49, %v73, 0.0
    %v85 = vadd.f32 %v83, %v84
    %86 = vadd.xlane.f32.xlu0 %v85
    %v87 = vpop.xlane.xlu0 %86
    %v88 = vsel %vm49, %v82, 0.0
    %v89 = vsel %vm49, %v87, 0.0
    %v90 = vadd.f32 %v88, %v89
    %v91 = vmul.f32 %v62, 0.001953125
    %v92 = vmul.f32 %v90, 0.001953125
    %v93 = vmul.f32 %v91, %v91
    %v94 = vsub.f32 %v92, %v93
    %v95 = vmax.f32 %v94, 0.0
    %vm96 = vcmask 3072
    %97 = vst.msk [vmem:[%s4] sm:$0xf] %vm96, %v91
    %98 = vst.msk [vmem:[%s5] sm:$0xf] %vm96, %v95
    %v99 = vadd.f32 %v95, 1e-05
    %v100 = vrsqrt.pop %v99
    %v101 = vmul.f32 %v100, %v99
    %v102 = vmul.f32 %v101, %v100
    %v103 = vmul.f32 0.5, %v102
    %v104 = vsub.f32 1.5, %v103
    %v105 = vmul.f32 %v100, %v104
    %vm106 = vweird.f32 %v99
    %vm107 = vweird.f32 %v100
    %vm108 = vmor %vm106, %vm107
    %v109 = vsel %vm108, %v100, %v105
    %v110 = vld [vmem:[%s1] sm:$0xf]
    %v111 = vmul.f32 %v110, %v109
    %v112 = vld [vmem:[%s2] sm:$0xf]
    %v113 = vmul.f32 %v91, %v111
    %v114 = vsub.f32 %v112, %v113
    %116 = vset.pattern.permute.xlu0 0
    %117 = vperm.xlu0 %116, %v111
    %v118 = vpop.permute.xlu0 %117
    %v120 = vunpack.c.l.s4 839922192
    %v121 = vunpack.c.0.s8 %v120
    %v122 = vperm.slane %v118, %v121
    %v124 = vmul.f32 %v34, %v122
    %v125 = vmul.f32 %v35, %v122
    %127 = vset.pattern.permute.xlu0 0
    %128 = vperm.xlu0 %127, %v114
    %v129 = vpop.permute.xlu0 %128
    %v131 = vunpack.c.l.s4 839922192
    %v132 = vunpack.c.0.s8 %v131
    %v133 = vperm.slane %v129, %v132
    %v135 = vadd.f32 %v124, %v133
    %v136 = vadd.f32 %v125, %v133
    %137 = vst [vmem:[#allocation5] sm:$0xff] %v135
    %138 = vst [vmem:[#allocation5 + $0x8] sm:$0xff] %v136
    // Predicated region
    $region18: #{tpu_custom_call.1} parent=1 // pred_check
      _
    $region19: #{tpu_custom_call.1} parent=1 // pred_check_branch
      %140 = sbr.rel (0) target = $region21
    $region20: #{tpu_custom_call.1} parent=1 // pred_region
      %142 = vsyncadd [#allocation4], 0
      %s143 = sshll.u32 [#allocation5], 4
      %s144 = int_to_ptr.vmem [resolvable:$true] %s143
      %s145 = sshll.u32 %s3, 4
      %s146 = int_to_ptr.hbm [resolvable:$true] %s145
      %151 = dma.vmem_to_hbm [thread:$0]  %s144, 256, %s146, [#allocation4], 128, 128, 8
    $region21: #{tpu_custom_call.1} parent=1 // pred_fallthru
      _
    // Predicated region
    $region22: #{tpu_custom_call.1} parent=1 // pred_check
      _
    $region23: #{tpu_custom_call.1} parent=1 // pred_check_branch
      %153 = sbr.rel (0) target = $region25
    $region24: #{tpu_custom_call.1} parent=1 // pred_region
      _
    $region25: #{tpu_custom_call.1} parent=1 // pred_fallthru
      _
    // Predicated region
    $region26: #{tpu_custom_call.1} parent=1 // pred_check
      _
    $region27: #{tpu_custom_call.1} parent=1 // pred_check_branch
      %155 = sbr.rel (0) target = $region29
    $region28: #{tpu_custom_call.1} parent=1 // pred_region
      _
    $region29: #{tpu_custom_call.1} parent=1 // pred_fallthru
      _
    // Predicated region
    $region30: #{tpu_custom_call.1} parent=1 // pred_check
      _
    $region31: #{tpu_custom_call.1} parent=1 // pred_check_branch
      %157 = sbr.rel (0) target = $region33
    $region32: #{tpu_custom_call.1} parent=1 // pred_region
      %159 = dma.done [#allocation4], 256
    $region33: #{tpu_custom_call.1} parent=1 // pred_fallthru
      _
    // Predicated region
    $region34: #{tpu_custom_call.1} parent=1 // pred_check
      _
    $region35: #{tpu_custom_call.1} parent=1 // pred_check_branch
      %161 = sbr.rel (0) target = $region37
    $region36: #{tpu_custom_call.1} parent=1 // pred_region
      _
    $region37: #{tpu_custom_call.1} parent=1 // pred_fallthru
      _
    // Predicated region
    $region38: #{tpu_custom_call.1} parent=1 // pred_check
      _
    $region39: #{tpu_custom_call.1} parent=1 // pred_check_branch
      %163 = sbr.rel (0) target = $region41
    $region40: #{tpu_custom_call.1} parent=1 // pred_region
      _
    $region41: #{tpu_custom_call.1} parent=1 // pred_fallthru
      _
    %164 = vsyncpa [#allocation3], 1
    %165 = vsyncpa [#allocation4], 1

</llo_original>
